<compile_context>
chip_gen: v7x
topology: tpu7x:2x2x1
jax: 0.10.0
libtpu: 0.0.40
codegen_flags: <defaults>
</compile_context>

<pallas_src>
import functools

import jax
import jax.numpy as jnp
from jax import lax
from jax.experimental import pallas as pl
from jax.experimental.pallas import tpu as pltpu


@functools.lru_cache(maxsize=1)
def _vmem_limit_bytes():
    """Scoped-VMEM limit per generation: ~3/4 of physical capacity.

    ~96 MiB on 128-MiB parts (v5e/v6e), ~48 MiB on v7x (64 MiB physical).
    Falls back to a v7x-safe 48 MiB if the query is unavailable.
    """
    try:
        cap = getattr(pltpu.get_tpu_info(), "vmem_capacity_bytes", None)
        if cap:
            return int(cap) * 3 // 4
    except Exception:  # pragma: no cover - defensive, query is best-effort
        pass
    return 48 * 1024 * 1024


@functools.lru_cache(maxsize=1)
def _bf16_eup_available():
    """bf16 EUP (fast bf16 exp) exists on v6e/v7x; keep f32 exp elsewhere."""
    try:
        kind = jax.devices()[0].device_kind.lower()
    except Exception:  # pragma: no cover
        return False
    return ("v6" in kind) or ("v7" in kind)


def _choose_k_tile(k_dim, preferred=512, align=128):
    """Largest multiple of `align` <= preferred that divides k_dim, else k_dim.

    The reduction axis must tile exactly (padded K garbage would corrupt the
    accumulator), so fall back to the full K when nothing divides.
    """
    if k_dim <= preferred:
        return k_dim
    t = (preferred // align) * align
    while t >= align:
        if k_dim % t == 0:
            return t
        t -= align
    return k_dim


def _choose_q_tile(n, preferred=256, align=8):
    """Query-row tile: full N when small, else a multiple-of-8 divisor of N."""
    if n <= 2 * preferred:
        return n
    t = (preferred // align) * align
    while t >= align:
        if n % t == 0:
            return t
        t -= align
    return n


# ---------------------------------------------------------------------------
# Kernel 1: tiled dense layer  y = x @ w + b
#   grid = (M/tm, N/tn, K/tk); K last + "arbitrary"; resident f32 accumulator.
#   Operand dtype (f32 or pre-cast bf16) is decided by the caller.
# ---------------------------------------------------------------------------
def _linear_kernel(x_ref, w_ref, b_ref, o_ref, acc_ref):
    @pl.when(pl.program_id(2) == 0)
    def _():
        acc_ref[...] = jnp.zeros_like(acc_ref)

    acc_ref[...] += jnp.dot(x_ref[...], w_ref[...],
                            preferred_element_type=jnp.float32)

    @pl.when(pl.program_id(2) == pl.num_programs(2) - 1)
    def _():
        o_ref[...] = (acc_ref[...] + b_ref[...]).astype(o_ref.dtype)


def linear(x2d, w, b, *, out_dtype=jnp.float32):
    """x2d: (M, K), w: (K, Nout) (same dtype), b: (Nout,) f32 -> (M, Nout)."""
    M, K = x2d.shape
    Nout = w.shape[1]
    b2d = b.reshape(1, Nout).astype(jnp.float32)   # bias added in f32

    # 512-wide tiles hit ~85% of HBM roofline and cut weight re-streaming;
    # full dims when small (always BlockSpec-legal).
    tm = M if M <= 512 else 512
    tn = Nout if Nout <= 512 else 512
    tk = _choose_k_tile(K)

    grid = (pl.cdiv(M, tm), pl.cdiv(Nout, tn), K // tk)

    return pl.pallas_call(
        _linear_kernel,
        out_shape=jax.ShapeDtypeStruct((M, Nout), out_dtype),
        grid_spec=pltpu.PrefetchScalarGridSpec(
            num_scalar_prefetch=0,
            grid=grid,
            in_specs=[
                pl.BlockSpec((tm, tk), lambda i, j, k: (i, k)),
                pl.BlockSpec((tk, tn), lambda i, j, k: (k, j)),
                pl.BlockSpec((1, tn), lambda i, j, k: (0, j)),
            ],
            out_specs=pl.BlockSpec((tm, tn), lambda i, j, k: (i, j)),
            scratch_shapes=[pltpu.VMEM((tm, tn), jnp.float32)],
        ),
        compiler_params=pltpu.CompilerParams(
            dimension_semantics=("parallel", "parallel", "arbitrary"),
            vmem_limit_bytes=_vmem_limit_bytes(),
        ),
    )(x2d, w, b2d)


# ---------------------------------------------------------------------------
# Kernel 2: attention core over the packed qkv activation.
#   input  : (B, N, 3E) packed as [q(H,Hd) | k(H,Hd) | v(H,Hd)] on lanes
#   output : (B, N, E)  head-merged layout (directly feeds the output proj)
#   grid   : (B, N/tq) both "parallel"; the (N, 3E) block is resident across
#            query tiles (block index ignores qi -> fetched once per batch).
# ---------------------------------------------------------------------------
def _attn_kernel(qkv_ref, o_ref, *, num_heads, head_dim, tq, scale,
                 exp_bf16, approx_recip):
    emb = num_heads * head_dim
    n_tokens = qkv_ref.shape[1]

    # Query-row window of this grid step inside the resident (N, 3E) block.
    if tq == n_tokens:
        row0 = 0                                   # single tile: static slice
    else:
        row0 = pl.multiple_of(pl.program_id(1) * tq, 8)

    # Head grouping: >=128-lane slabs (or the full E when E <= 128) so ref
    # slices stay vreg-aligned and each group gets one lane-dense o_ref store
    # (bounds per-head live intermediates instead of a giant final concat).
    if head_dim >= 128:
        hpg = 1
    elif head_dim * num_heads <= 128:
        hpg = num_heads
    else:
        hpg = max(1, 128 // head_dim)

    for h0 in range(0, num_heads, hpg):
        nh = min(hpg, num_heads - h0)
        goff = h0 * head_dim
        gw = nh * head_dim

        # Group slabs: load only the lane windows we need from VMEM.
        # Fold the softmax scale into q: O(tq*gw) VALU work, not O(tq*N).
        q_g = qkv_ref[0, pl.ds(row0, tq), pl.ds(goff, gw)] * scale     # (tq, gw)
        k_g = qkv_ref[0, :, pl.ds(emb + goff, gw)]                     # (N, gw)
        v_g = qkv_ref[0, :, pl.ds(2 * emb + goff, gw)]                 # (N, gw)

        outs = []
        for i in range(nh):                        # <= 2 heads/group typically
            qh = q_g[:, i * head_dim:(i + 1) * head_dim]
            kh = k_g[:, i * head_dim:(i + 1) * head_dim]
            vh = v_g[:, i * head_dim:(i + 1) * head_dim]

            # scores[r, c] = sum_d qh[r, d] * kh[c, d]  (no explicit k.T /
            # XLU relayout before the MXU).
            s = lax.dot_general(qh, kh, (((1,), (1,)), ((), ())),
                                preferred_element_type=jnp.float32)    # (tq,N)

            m = jnp.max(s, axis=-1, keepdims=True)
            z = s - m
            if exp_bf16:
                # bf16 exp -> 2x EUP rate on v6e/v7x; row-sum stays in f32.
                p = jnp.exp(z.astype(jnp.bfloat16))
                denom = jnp.sum(p.astype(jnp.float32), axis=-1, keepdims=True)
                p_mm = p
            else:
                p = jnp.exp(z)
                denom = jnp.sum(p, axis=-1, keepdims=True)
                p_mm = p.astype(vh.dtype)
            # TODO(synk): attn_drop skipped (eval-mode identity).

            o_h = jnp.dot(p_mm, vh, preferred_element_type=jnp.float32)  # (tq,Hd)
            # Normalize after P@V: O(tq*Hd) scaling instead of O(tq*N).
            if approx_recip:
                o_h = o_h * pl.reciprocal(denom, approx=True)
            else:
                o_h = o_h / denom
            outs.append(o_h)

        slab = outs[0] if nh == 1 else jnp.concatenate(outs, axis=-1)
        o_ref[0, :, pl.ds(goff, gw)] = slab.astype(o_ref.dtype)


def attention_core(qkv, num_heads, head_dim, scale, *, exp_bf16=False,
                   approx_recip=True, out_dtype=None):
    """qkv: (B, N, 3E) -> (B, N, E) head-merged."""
    B, N, three_e = qkv.shape
    E = num_heads * head_dim
    assert three_e == 3 * E
    out_dtype = qkv.dtype if out_dtype is None else out_dtype

    tq = _choose_q_tile(N)
    grid = (B, N // tq)   # 2nd "parallel" axis -> both v7x TensorCores busy

    kern = functools.partial(
        _attn_kernel, num_heads=num_heads, head_dim=head_dim, tq=tq,
        scale=scale, exp_bf16=exp_bf16, approx_recip=approx_recip)

    return pl.pallas_call(
        kern,
        out_shape=jax.ShapeDtypeStruct((B, N, E), out_dtype),
        grid_spec=pltpu.PrefetchScalarGridSpec(
            num_scalar_prefetch=0,
            grid=grid,
            in_specs=[pl.BlockSpec((1, N, three_e), lambda b, qi: (b, 0, 0))],
            out_specs=pl.BlockSpec((1, tq, E), lambda b, qi: (b, qi, 0)),
        ),
        compiler_params=pltpu.CompilerParams(
            dimension_semantics=("parallel", "parallel"),
            vmem_limit_bytes=_vmem_limit_bytes(),
        ),
    )(qkv)


# ---------------------------------------------------------------------------
# Full module forward (only cheap contiguous reshapes / dtype casts between
# kernels; no HBM transposes).
# ---------------------------------------------------------------------------
def attention_forward(x, params, num_heads, *, fast=True):
    """x: (B, N, E) f32 -> (B, N, E) f32.

    fast=True : bf16 MXU operands on all generations (pre-cast outside the
                kernels so DMA bytes / VMEM blocks halve), bf16 exp where the
                EUP supports it (v6e/v7x), approx reciprocal. Accumulation,
                biases and softmax statistics stay f32.
    fast=False: pure f32 validation path.
    """
    B, N, E = x.shape
    head_dim = E // num_heads
    scale = 1.0 / float(head_dim) ** 0.5

    cdt = jnp.bfloat16 if fast else jnp.float32
    # Pre-cast weights + activations OUTSIDE the kernels: every DMA stream
    # (weights, qkv activation round-trip, attention output) then moves cdt.
    x2d = x.reshape(B * N, E).astype(cdt)
    w_qkv = params["w_qkv"].astype(cdt)
    w_proj = params["w_proj"].astype(cdt)

    qkv = linear(x2d, w_qkv, params["b_qkv"], out_dtype=cdt)       # (B*N, 3E)
    qkv = qkv.reshape(B, N, 3 * E)                                 # contiguous

    wa = attention_core(
        qkv, num_heads, head_dim, scale,
        exp_bf16=fast and _bf16_eup_available(),
        approx_recip=fast,
        out_dtype=cdt)                                             # (B, N, E)

    out = linear(wa.reshape(B * N, E), w_proj, params["b_proj"],
                 out_dtype=jnp.float32)                            # (B*N, E)
    # TODO(synk): proj_drop skipped (eval-mode identity).
    return out.reshape(B, N, E)


def _reference_forward(x, params, num_heads):
    """Plain-JAX reference replicating the PyTorch forward (eval mode)."""
    B, N, E = x.shape
    head_dim = E // num_heads
    scale = 1.0 / float(head_dim) ** 0.5
    qkv = x @ params["w_qkv"] + params["b_qkv"]
    qkv = qkv.reshape(B, N, 3, num_heads, head_dim)
    qkv = jnp.transpose(qkv, (0, 2, 3, 1, 4))
    q, k, v = qkv[:, 0], qkv[:, 1], qkv[:, 2]
    scores = jnp.einsum("bhqd,bhkd->bhqk", q, k) * scale
    attn = jax.nn.softmax(scores, axis=-1)
    wa = jnp.einsum("bhqk,bhkd->bhqd", attn, v)
    wa = jnp.transpose(wa, (0, 2, 1, 3)).reshape(B, N, E)
    return wa @ params["w_proj"] + params["b_proj"]


if __name__ == "__main__":
    # Small, deterministic config consistent with the module.
    B, N, E, H = 2, 8, 32, 4

    key = jax.random.PRNGKey(0)
    kx, k1, k2, k3, k4 = jax.random.split(key, 5)

    x = jax.random.normal(kx, (B, N, E), dtype=jnp.float32)

    # Parameters stored as (in, out) so kernels compute x @ w + b.
    params = {
        "w_qkv": 0.02 * jax.random.normal(k1, (E, 3 * E), dtype=jnp.float32),
        "b_qkv": 0.01 * jax.random.normal(k2, (3 * E,), dtype=jnp.float32),
        "w_proj": 0.02 * jax.random.normal(k3, (E, E), dtype=jnp.float32),
        "b_proj": 0.01 * jax.random.normal(k4, (E,), dtype=jnp.float32),
    }

    ref = _reference_forward(x, params, num_heads=H)

    # Exact validation path (f32 operands, exact divide).
    out = attention_forward(x, params, num_heads=H, fast=False)
    out = jax.block_until_ready(out)
    assert out.shape == (B, N, E)
    assert jnp.allclose(out, ref, atol=1e-5, rtol=1e-5), "f32 path mismatch"

    # Fast path (bf16 operands everywhere, bf16 exp on v6e/v7x, approx recip).
    out_fast = attention_forward(x, params, num_heads=H, fast=True)
    out_fast = jax.block_until_ready(out_fast)
    assert out_fast.shape == (B, N, E)
    assert jnp.allclose(out_fast, ref, atol=5e-2, rtol=5e-2), "bf16 path mismatch"

    print("KERNEL_OK")
</pallas_src>

<mosaic_0001>
module attributes {stable_mosaic.version = 11 : i64} {
  func.func @_linear_kernel(%arg0: i32, %arg1: i32, %arg2: i32, %arg3: memref<16x32xf32, #tpu.memory_space<vmem>>, %arg4: memref<32x96xf32, #tpu.memory_space<vmem>>, %arg5: memref<1x96xf32, #tpu.memory_space<vmem>>, %arg6: memref<16x96xf32, #tpu.memory_space<vmem>>, %arg7: memref<16x96xf32, #tpu.memory_space<vmem>>) attributes {dimension_semantics = [#tpu.dimension_semantics<parallel>, #tpu.dimension_semantics<parallel>, #tpu.dimension_semantics<arbitrary>], iteration_bounds = array<i64: 1, 1, 1>, scalar_prefetch = 0 : i64, scratch_operands = 1 : i64, tpu.core_type = #tpu.core_type<tc>, window_params = [{transform_indices = @transform_0, window_bounds = array<i64: 16, 32>}, {transform_indices = @transform_1, window_bounds = array<i64: 32, 96>}, {transform_indices = @transform_2, window_bounds = array<i64: 1, 96>}, {transform_indices = @transform_3, window_bounds = array<i64: 16, 96>}]} {
    %c0_i32 = arith.constant 0 : i32
    %0 = arith.cmpi eq, %arg2, %c0_i32 : i32
    %1 = arith.extui %0 : i1 to i32
    %c0_i32_0 = arith.constant 0 : i32
    %2 = arith.cmpi ne, %1, %c0_i32_0 : i32
    scf.if %2 {
      %cst_10 = arith.constant 0.000000e+00 : f32
      %12 = vector.broadcast %cst_10 : f32 to vector<16x96xf32>
      %c0_11 = arith.constant 0 : index
      %c0_12 = arith.constant 0 : index
      %13 = vector.load %arg7[%c0_11, %c0_12] : memref<16x96xf32, #tpu.memory_space<vmem>>, vector<16x96xf32>
      tpu.vector_store %arg7[%c0_11, %c0_12], %12 {strides = array<i32>} : memref<16x96xf32, #tpu.memory_space<vmem>>, vector<16x96xf32>,
    } else {
    }
    %c0 = arith.constant 0 : index
    %c0_1 = arith.constant 0 : index
    %3 = vector.load %arg7[%c0, %c0_1] : memref<16x96xf32, #tpu.memory_space<vmem>>, vector<16x96xf32>
    %c0_2 = arith.constant 0 : index
    %c0_3 = arith.constant 0 : index
    %4 = vector.load %arg3[%c0_2, %c0_3] : memref<16x32xf32, #tpu.memory_space<vmem>>, vector<16x32xf32>
    %c0_4 = arith.constant 0 : index
    %c0_5 = arith.constant 0 : index
    %5 = vector.load %arg4[%c0_4, %c0_5] : memref<32x96xf32, #tpu.memory_space<vmem>>, vector<32x96xf32>
    %cst = arith.constant dense<0.000000e+00> : vector<16x96xf32>
    %6 = tpu.matmul %4, %5, %cst {dimension_numbers = #tpu.dot_dimension_numbers<[1], [0], [0], [1], [0, 0, 1, 1], [], []>} : vector<16x32xf32>, vector<32x96xf32>, vector<16x96xf32> -> vector<16x96xf32>
    %7 = arith.addf %3, %6 : vector<16x96xf32>
    %c0_6 = arith.constant 0 : index
    %c0_7 = arith.constant 0 : index
    %8 = vector.load %arg7[%c0_6, %c0_7] : memref<16x96xf32, #tpu.memory_space<vmem>>, vector<16x96xf32>
    tpu.vector_store %arg7[%c0_6, %c0_7], %7 {strides = array<i32>} : memref<16x96xf32, #tpu.memory_space<vmem>>, vector<16x96xf32>,
    %c0_i32_8 = arith.constant 0 : i32
    %9 = arith.cmpi eq, %arg2, %c0_i32_8 : i32
    %10 = arith.extui %9 : i1 to i32
    %c0_i32_9 = arith.constant 0 : i32
    %11 = arith.cmpi ne, %10, %c0_i32_9 : i32
    scf.if %11 {
      %c0_10 = arith.constant 0 : index
      %c0_11 = arith.constant 0 : index
      %12 = vector.load %arg7[%c0_10, %c0_11] : memref<16x96xf32, #tpu.memory_space<vmem>>, vector<16x96xf32>
      %c0_12 = arith.constant 0 : index
      %c0_13 = arith.constant 0 : index
      %13 = vector.load %arg5[%c0_12, %c0_13] : memref<1x96xf32, #tpu.memory_space<vmem>>, vector<1x96xf32>
      %14 = vector.broadcast %13 : vector<1x96xf32> to vector<16x96xf32>
      %15 = arith.addf %12, %14 : vector<16x96xf32>
      %c0_14 = arith.constant 0 : index
      %c0_15 = arith.constant 0 : index
      %16 = vector.load %arg6[%c0_14, %c0_15] : memref<16x96xf32, #tpu.memory_space<vmem>>, vector<16x96xf32>
      tpu.vector_store %arg6[%c0_14, %c0_15], %15 {strides = array<i32>} : memref<16x96xf32, #tpu.memory_space<vmem>>, vector<16x96xf32>,
    } else {
    }
    return
  }
  func.func @transform_0(%arg0: i32, %arg1: i32, %arg2: i32) -> (i32, i32) {
    %c0_i32 = arith.constant 0 : i32
    return %arg0, %arg2 : i32, i32
  }
  func.func @transform_1(%arg0: i32, %arg1: i32, %arg2: i32) -> (i32, i32) {
    %c0_i32 = arith.constant 0 : i32
    return %arg2, %arg1 : i32, i32
  }
  func.func @transform_2(%arg0: i32, %arg1: i32, %arg2: i32) -> (i32, i32) {
    %c0_i32 = arith.constant 0 : i32
    %c0_i32_0 = arith.constant 0 : i32
    return %c0_i32, %arg1 : i32, i32
  }
  func.func @transform_3(%arg0: i32, %arg1: i32, %arg2: i32) -> (i32, i32) {
    %c0_i32 = arith.constant 0 : i32
    return %arg0, %arg1 : i32, i32
  }
}

</mosaic_0001>

<llo_original>
// kernel: tpu_custom_call.1
$region0: #{tpu_custom_call.1}
  #allocation0 [shape = 'u32[]', space=smem, size = 0x4, offset = 0x4, fixed_abs, tag = 'smem constant byte address 0x4 - core index']
  #allocation1 [shape = 'u32[144,128]{1,0:T(1,128)}', space=vmem, size = 0x12000, scoped, tag = 'internal scratch']
  #allocation2 [shape = 'f32[16,96]{1,0:T(8,128)}', space=vmem, size = 0x2000, scoped, tag = 'scratch operand']
  %s0 = inlined_call_operand.hbm [shape: f32[16,32], index: 0, kind: input, shape index: {}]
  %s1 = inlined_call_operand.hbm [shape: f32[32,96], index: 1, kind: input, shape index: {}]
  %s2 = inlined_call_operand.vmem [shape: f32[1,96], index: 2, kind: input, shape index: {}]
  %s3 = inlined_call_operand.hbm [shape: f32[16,96], index: 3, kind: output, shape index: {}]
  %s4 = sld [smem:[#allocation0]]
  $region38: #{tpu_custom_call.1} parent=0
    _
  %s6 = ssub.s32 1, %s4
  %s7 = scalar_select 0, %s6, %s4
  $region1: #{tpu_custom_call.1} parent=0
    #allocation3 [shape = 'u8[8192]{0}', space=vmem, size = 0x2000, scoped, tag = 'input window, operand 0, single buffered']
    #allocation4 [shape = 's32[1]{0}', space=sflag, size = 0x4, scoped, tag = 'scoped memory for tpu_custom_call.1']
    #allocation5 [shape = 's32[1]{0}', space=sflag, size = 0x4, scoped, tag = 'scoped memory for tpu_custom_call.1']
    #allocation6 [shape = 'u8[16384]{0}', space=vmem, size = 0x4000, scoped, tag = 'input window, operand 1, single buffered']
    #allocation7 [shape = 's32[1]{0}', space=sflag, size = 0x4, scoped, tag = 'scoped memory for tpu_custom_call.1']
    #allocation8 [shape = 'u8[8192]{0}', space=vmem, size = 0x2000, scoped, tag = 'output window, operand 0, single buffered']
    %8 = vsyncpa [#allocation4], 0
    %9 = vsyncpa [#allocation7], 0
    %10 = vsyncpa [#allocation5], 0
    // Predicated region
    $region2: #{tpu_custom_call.1} parent=1 // pred_check
      _
    $region3: #{tpu_custom_call.1} parent=1 // pred_check_branch
      %12 = sbr.rel (0) target = $region5
    $region4: #{tpu_custom_call.1} parent=1 // pred_region
      %s14 = ssub.s32 256, 256
      %15 = vsyncadd [#allocation4], %s14
      %s16 = sshll.u32 [#allocation3], 4
      %s17 = int_to_ptr.vmem [resolvable:$true] %s16
      %22 = dma.hbm_to_vmem [thread:$0]  %s0, 256, %s17, [#allocation4], 128, 128, 8
    $region5: #{tpu_custom_call.1} parent=1 // pred_fallthru
      _
    // Predicated region
    $region6: #{tpu_custom_call.1} parent=1 // pred_check
      _
    $region7: #{tpu_custom_call.1} parent=1 // pred_check_branch
      %24 = sbr.rel (0) target = $region9
    $region8: #{tpu_custom_call.1} parent=1 // pred_region
      %s26 = ssub.s32 512, 512
      %27 = vsyncadd [#allocation7], %s26
      %s28 = sshll.u32 [#allocation6], 4
      %s29 = int_to_ptr.vmem [resolvable:$true] %s28
      %34 = dma.hbm_to_vmem [thread:$0]  %s1, 512, %s29, [#allocation7], 128, 128, 8
    $region9: #{tpu_custom_call.1} parent=1 // pred_fallthru
      _
    // Predicated region
    $region10: #{tpu_custom_call.1} parent=1 // pred_check
      _
    $region11: #{tpu_custom_call.1} parent=1 // pred_check_branch
      %36 = sbr.rel (0) target = $region13
    $region12: #{tpu_custom_call.1} parent=1 // pred_region
      _
    $region13: #{tpu_custom_call.1} parent=1 // pred_fallthru
      _
    // Predicated region
    $region14: #{tpu_custom_call.1} parent=1 // pred_check
      _
    $region15: #{tpu_custom_call.1} parent=1 // pred_check_branch
      %38 = sbr.rel (0) target = $region17
    $region16: #{tpu_custom_call.1} parent=1 // pred_region
      %39 = dma.done [#allocation4], 256
    $region17: #{tpu_custom_call.1} parent=1 // pred_fallthru
      _
    // Predicated region
    $region18: #{tpu_custom_call.1} parent=1 // pred_check
      _
    $region19: #{tpu_custom_call.1} parent=1 // pred_check_branch
      %41 = sbr.rel (0) target = $region21
    $region20: #{tpu_custom_call.1} parent=1 // pred_region
      %42 = dma.done [#allocation7], 512
    $region21: #{tpu_custom_call.1} parent=1 // pred_fallthru
      _
    %p43 = scmp.eq.s32.totalorder 0, 0
    // Predicated region
    $region22: #{tpu_custom_call.1} parent=1 // pred_check
      %p44 = pneg %p43
    $region23: #{tpu_custom_call.1} parent=1 // pred_check_branch
      %46 = sbr.rel (%p44) target = $region25
    $region24: #{tpu_custom_call.1} parent=1 // pred_region
      %vm47 = vcmask 785408
      %48 = vst.msk [vmem:[#allocation2] sm:$0xff] %vm47, 0.0
      %49 = vst.msk [vmem:[#allocation2 + $0x8] sm:$0xff] %vm47, 0.0
    $region25: #{tpu_custom_call.1} parent=1 // pred_fallthru
      _
    %v50 = vld [vmem:[#allocation2] sm:$0xff]
    %v51 = vld [vmem:[#allocation2 + $0x8] sm:$0xff]
    %v52 = vld [vmem:[#allocation3] sm:$0xff]
    %v53 = vld [vmem:[#allocation3 + $0x8] sm:$0xff]
    %v54 = vld [vmem:[#allocation6] sm:$0xff]
    %v55 = vld [vmem:[#allocation6 + $0x8] sm:$0xff]
    %v56 = vld [vmem:[#allocation6 + $0x10] sm:$0xff]
    %v57 = vld [vmem:[#allocation6 + $0x18] sm:$0xff]
    %vm58 = vcmask 261120
    %v60 = vsel %vm58, %v52, 0
    %v63 = vsel %vm58, %v53, 0
    %65 = vmatprep.subr.mxu0 0.0
    %66 = vmatpush1.msra.mxu0 %v54
    %67 = vmatprep.subr.mxu0 0.0
    %68 = vmatpush1.msra.mxu0 %v55
    %69 = vmatprep.subr.mxu0 0.0
    %70 = vmatpush1.msra.mxu0 %v56
    %71 = vmatprep.subr.mxu0 0.0
    %72 = vmatpush1.msra.mxu0 %v57
    %73 = vmatprep.subr.mxu0 0.0
    %74 = vmatpush1.msra.mxu0 0.0
    %75 = vmatprep.subr.mxu0 0.0
    %76 = vmatpush1.msra.mxu0 0.0
    %77 = vmatprep.subr.mxu0 0.0
    %78 = vmatpush1.msra.mxu0 0.0
    %79 = vmatprep.subr.mxu0 0.0
    %80 = vmatpush1.msra.mxu0 0.0
    %81 = vmatprep.subr.mxu0 0.0
    %82 = vmatpush1.msra.mxu0 0.0
    %83 = vmatprep.subr.mxu0 0.0
    %84 = vmatpush1.msra.mxu0 0.0
    %85 = vmatprep.subr.mxu0 0.0
    %86 = vmatpush1.msra.mxu0 0.0
    %87 = vmatprep.subr.mxu0 0.0
    %88 = vmatpush1.msra.mxu0 0.0
    %89 = vmatprep.subr.mxu0 0.0
    %90 = vmatpush1.msra.mxu0 0.0
    %91 = vmatprep.subr.mxu0 0.0
    %92 = vmatpush1.msra.mxu0 0.0
    %93 = vmatprep.subr.mxu0 0.0
    %94 = vmatpush1.msra.mxu0 0.0
    %95 = vmatprep.subr.mxu0 0.0
    %96 = vmatpush1.msra.mxu0 0.0
    %97 = vmatprep.subr.mxu0 0.0
    %98 = vmatpush1.msra.mxu0 0.0
    %99 = vmatprep.subr.mxu0 0.0
    %100 = vmatpush1.msra.mxu0 0.0
    %101 = vmatprep.subr.mxu0 0.0
    %102 = vmatpush1.msra.mxu0 0.0
    %103 = vmatprep.subr.mxu0 0.0
    %104 = vmatpush1.msra.mxu0 0.0
    %105 = vmatprep.subr.mxu0 0.0
    %106 = vmatpush1.msra.mxu0 0.0
    %107 = vmatprep.subr.mxu0 0.0
    %108 = vmatpush1.msra.mxu0 0.0
    %109 = vmatprep.subr.mxu0 0.0
    %110 = vmatpush1.msra.mxu0 0.0
    %111 = vmatprep.subr.mxu0 0.0
    %112 = vmatpush1.msra.mxu0 0.0
    %113 = vmatprep.subr.mxu0 0.0
    %114 = vmatpush1.msra.mxu0 0.0
    %115 = vmatprep.subr.mxu0 0.0
    %116 = vmatpush1.msra.mxu0 0.0
    %117 = vmatprep.subr.mxu0 0.0
    %118 = vmatpush1.msra.mxu0 0.0
    %119 = vmatprep.subr.mxu0 0.0
    %120 = vmatpush1.msra.mxu0 0.0
    %121 = vmatprep.subr.mxu0 0.0
    %122 = vmatpush1.msra.mxu0 0.0
    %123 = vmatprep.subr.mxu0 0.0
    %124 = vmatpush1.msra.mxu0 0.0
    %125 = vmatprep.subr.mxu0 0.0
    %126 = vmatpush1.msra.mxu0 0.0
    %127 = vmatprep.subr.mxu0 0.0
    %128 = vmatpush1.msra.mxu0 0.0
    %129 = vmatprep.mubr.f32.mxu0 0.0
    %130 = vmatmul.mubr.f32.gmra.mrb[0].mxu0 %v60
    %v131 = vpop.f32.mrb[0].mxu0
    %v132 = vadd.f32 0.0, %v131
    %v133 = vpop.f32.mrb[0].mxu0
    %134 = vmatprep.mubr.f32.mxu0 0.0
    %135 = vmatmul.mubr.f32.gmra.mrb[0].mxu0 %v63
    %v136 = vpop.f32.mrb[0].mxu0
    %v137 = vadd.f32 0.0, %v136
    %v138 = vpop.f32.mrb[0].mxu0
    %139 = vdwg.mxu0
    %v140 = vadd.f32 %v50, %v132
    %v141 = vadd.f32 %v51, %v137
    %vm142 = vcmask 785408
    %143 = vst.msk [vmem:[#allocation2] sm:$0xff] %vm142, %v140
    %144 = vst.msk [vmem:[#allocation2 + $0x8] sm:$0xff] %vm142, %v141
    // Predicated region
    $region26: #{tpu_custom_call.1} parent=1 // pred_check
      %p145 = pneg %p43
    $region27: #{tpu_custom_call.1} parent=1 // pred_check_branch
      %147 = sbr.rel (%p145) target = $region29
    $region28: #{tpu_custom_call.1} parent=1 // pred_region
      %v148 = vld [vmem:[#allocation2] sm:$0xff]
      %v149 = vld [vmem:[#allocation2 + $0x8] sm:$0xff]
      %v150 = vld [vmem:[%s2] sm:$0x1]
      %v152 = vlaneseq
      %v153 = vshrl.u32 %v152, 7
      %v154 = vsub.s32 0, %v153
      %v155 = vrot.slane %v150, %v154
      %v157 = vadd.f32 %v148, %v155
      %v158 = vadd.f32 %v149, %v155
      %159 = vst.msk [vmem:[#allocation8] sm:$0xff] %vm142, %v157
      %160 = vst.msk [vmem:[#allocation8 + $0x8] sm:$0xff] %vm142, %v158
    $region29: #{tpu_custom_call.1} parent=1 // pred_fallthru
      _
    // Predicated region
    $region30: #{tpu_custom_call.1} parent=1 // pred_check
      _
    $region31: #{tpu_custom_call.1} parent=1 // pred_check_branch
      %162 = sbr.rel (0) target = $region33
    $region32: #{tpu_custom_call.1} parent=1 // pred_region
      %s164 = ssub.s32 256, 256
      %165 = vsyncadd [#allocation5], %s164
      %s166 = sshll.u32 [#allocation8], 4
      %s167 = int_to_ptr.vmem [resolvable:$true] %s166
      %172 = dma.vmem_to_hbm [thread:$0]  %s167, 256, %s3, [#allocation5], 128, 128, 8
    $region33: #{tpu_custom_call.1} parent=1 // pred_fallthru
      _
    // Predicated region
    $region34: #{tpu_custom_call.1} parent=1 // pred_check
      _
    $region35: #{tpu_custom_call.1} parent=1 // pred_check_branch
      %174 = sbr.rel (0) target = $region37
    $region36: #{tpu_custom_call.1} parent=1 // pred_region
      %175 = dma.done [#allocation5], 256
    $region37: #{tpu_custom_call.1} parent=1 // pred_fallthru
      _
    %176 = vsyncpa [#allocation4], 1
    %177 = vsyncpa [#allocation7], 1
    %178 = vsyncpa [#allocation5], 1

</llo_original>
